<compile_context>
chip_gen: v7x
topology: tpu7x:2x2x1
jax: 0.10.0
libtpu: 0.0.40
codegen_flags: <defaults>
</compile_context>

<pallas_src>
import functools

import jax
import jax.numpy as jnp
import numpy as np
from jax import lax
from jax.experimental import pallas as pl
from jax.experimental.pallas import tpu as pltpu


# ----------------------------------------------------------------------------
# Pallas kernel: whole sequence in one invocation.
# ----------------------------------------------------------------------------
def _rnn_decoder_kernel(xw_ref, h0_ref, c0_ref, whh_ref, wff_ref, bff_ref,
                        logp_ref, h_out_ref, c_out_ref):
    T = xw_ref.shape[0]
    H = h0_ref.shape[1]

    # Hoisted loads (once, outside the recurrence).
    whh = whh_ref[...]                                        # (H, 4H)

    h0 = h0_ref[...].astype(jnp.float32)                      # (Bp, H)
    c0 = c0_ref[...].astype(jnp.float32)                      # (Bp, H)

    # Recurrence: only h @ W_hh^T is serially dependent per step.  Gate order
    # is [i, f, o, g] (permuted in the wrapper) so sigmoid covers a contiguous
    # 3H block and tanh only the trailing H block.
    def step(t, carry):
        h, c = carry
        gates = xw_ref[t] + jnp.dot(h, whh,
                                    preferred_element_type=jnp.float32)
        sig = jax.nn.sigmoid(gates[:, :3 * H])                # i, f, o
        g_g = jnp.tanh(gates[:, 3 * H:])                      # g
        i_g = sig[:, 0 * H:1 * H]
        f_g = sig[:, 1 * H:2 * H]
        o_g = sig[:, 2 * H:3 * H]
        c_new = f_g * c + i_g * g_g
        h_new = o_g * jnp.tanh(c_new)
        return (h_new, c_new)

    h, c = lax.fori_loop(0, T, step, (h0, c0), unroll=True)

    h_out_ref[...] = h.astype(h_out_ref.dtype)
    c_out_ref[...] = c.astype(c_out_ref.dtype)

    # Fused FF head + numerically-stable log_softmax on the final hidden state.
    logits = (jnp.dot(h, wff_ref[...], preferred_element_type=jnp.float32)
              + bff_ref[...])                                 # (Bp, V)
    m = jnp.max(logits, axis=1, keepdims=True)
    s = logits - m
    lse = jnp.log(jnp.sum(jnp.exp(s), axis=1, keepdims=True))
    logp_ref[...] = (s - lse).astype(logp_ref.dtype)


# ----------------------------------------------------------------------------
# Wrapper (glue: gate permutation, input-projection hoist, batch padding)
# ----------------------------------------------------------------------------
@functools.partial(jax.jit, static_argnames=())
def rnn_decoder_forward(x, h0, c0, params):
    """x: (B, T, E) batch_first; h0, c0: (1, B, H).  Returns (logp, (h, c))."""
    B, T, E = x.shape
    H = h0.shape[-1]
    V = params["w_ff"].shape[0]

    # Pad batch up to one full sublane tile.
    Bp = ((B + 7) // 8) * 8
    pad_b = Bp - B

    # Gate-order permutation on the 4H axis: [i, f, g, o] -> [i, f, o, g].
    perm = np.concatenate([np.arange(0 * H, 1 * H),
                           np.arange(1 * H, 2 * H),
                           np.arange(3 * H, 4 * H),
                           np.arange(2 * H, 3 * H)])

    wih_t = params["w_ih"].T[:, perm]                         # (E, 4H) permuted
    whh_t = params["w_hh"].T[:, perm]                         # (H, 4H) permuted
    b = (params["b_ih"] + params["b_hh"])[perm]               # (4H,)   permuted
    wff_t = params["w_ff"].T                                  # (H, V)
    bff = params["b_ff"].reshape(1, V)                        # (1, V)
    # NOTE: for production H/V on v6e/v7x, cast whh_t / wff_t to bf16 here
    # (keep preferred_element_type=f32 in-kernel) and tile the FF head over V.

    # Hoisted input projection: one big GEMM off the serial critical path.
    x_tm = jnp.transpose(x, (1, 0, 2))                        # (T, B, E)
    if pad_b:
        x_tm = jnp.pad(x_tm, ((0, 0), (0, pad_b), (0, 0)))
        h0p = jnp.pad(h0[0], ((0, pad_b), (0, 0)))
        c0p = jnp.pad(c0[0], ((0, pad_b), (0, 0)))
    else:
        h0p, c0p = h0[0], c0[0]
    xw = (jnp.einsum("tbe,eg->tbg", x_tm, wih_t,
                     preferred_element_type=jnp.float32)
          + b).astype(jnp.float32)                            # (T, Bp, 4H)

    full = lambda shape: pl.BlockSpec(shape, lambda i: (0,) * len(shape))

    logp, h_n, c_n = pl.pallas_call(
        _rnn_decoder_kernel,
        out_shape=(
            jax.ShapeDtypeStruct((Bp, V), x.dtype),
            jax.ShapeDtypeStruct((Bp, H), x.dtype),
            jax.ShapeDtypeStruct((Bp, H), x.dtype),
        ),
        grid_spec=pltpu.PrefetchScalarGridSpec(
            num_scalar_prefetch=0,
            grid=(1,),                 # single step: time loop is in-kernel
            in_specs=[
                full((T, Bp, 4 * H)),  # xw (precomputed, lane-dense)
                full((Bp, H)),         # h0
                full((Bp, H)),         # c0
                full((H, 4 * H)),      # W_hh^T (permuted gate order)
                full((H, V)),          # W_ff^T
                full((1, V)),          # b_ff
            ],
            out_specs=[full((Bp, V)), full((Bp, H)), full((Bp, H))],
        ),
        compiler_params=pltpu.CompilerParams(
            dimension_semantics=("arbitrary",)),
    )(xw, h0p, c0p, whh_t, wff_t, bff)

    return logp[:B], (h_n[:B][None], c_n[:B][None])


# ----------------------------------------------------------------------------
# Pure-JAX reference (matches PyTorch nn.LSTM + Linear + LogSoftmax semantics)
# ----------------------------------------------------------------------------
def rnn_decoder_reference(x, h0, c0, params):
    B, T, E = x.shape
    H = h0.shape[-1]
    wih, whh = params["w_ih"], params["w_hh"]
    b = params["b_ih"] + params["b_hh"]

    def step(carry, x_t):
        h, c = carry
        gates = x_t @ wih.T + h @ whh.T + b
        i = jax.nn.sigmoid(gates[:, 0 * H:1 * H])
        f = jax.nn.sigmoid(gates[:, 1 * H:2 * H])
        g = jnp.tanh(gates[:, 2 * H:3 * H])
        o = jax.nn.sigmoid(gates[:, 3 * H:4 * H])
        c_new = f * c + i * g
        h_new = o * jnp.tanh(c_new)
        return (h_new, c_new), None

    (h_n, c_n), _ = lax.scan(step, (h0[0], c0[0]), jnp.transpose(x, (1, 0, 2)))
    logits = h_n @ params["w_ff"].T + params["b_ff"]
    logp = jax.nn.log_softmax(logits, axis=1)
    return logp, (h_n[None], c_n[None])


# ----------------------------------------------------------------------------
# Deterministic parameter init (mirrors RNNDecoder.init_weight)
# ----------------------------------------------------------------------------
def xavier_uniform(key, shape, dtype=jnp.float32):
    fan_out, fan_in = shape
    bound = np.sqrt(6.0 / (fan_in + fan_out))
    return jax.random.uniform(key, shape, dtype, minval=-bound, maxval=bound)


def init_params(key, embed_size, hidden_size, out):
    k1, k2, k3, k4 = jax.random.split(key, 4)
    return {
        "w_ih": xavier_uniform(k1, (4 * hidden_size, embed_size)),
        "w_hh": xavier_uniform(k2, (4 * hidden_size, hidden_size)),
        "b_ih": jnp.zeros((4 * hidden_size,), jnp.float32),
        "b_hh": jnp.zeros((4 * hidden_size,), jnp.float32),
        "w_ff": xavier_uniform(k3, (out, hidden_size)),
        # nn.Linear default bias init (not overridden by init_weight)
        "b_ff": jax.random.uniform(k4, (out,), jnp.float32,
                                   minval=-1.0 / np.sqrt(hidden_size),
                                   maxval=1.0 / np.sqrt(hidden_size)),
    }


if __name__ == "__main__":
    # Small shapes consistent with the module: batch=4, seq=8, embed=16,
    # hidden=32 (=> 4H = 128, one lane tile), vocab(out)=128 (lane-dense
    # log-prob output), n_layers=1, batch_first=True.
    B, T, E, H, V = 4, 8, 16, 32, 128

    key = jax.random.PRNGKey(0)
    kx, kh, kc, kp = jax.random.split(key, 4)
    x = jax.random.normal(kx, (B, T, E), jnp.float32)
    h0 = jax.random.normal(kh, (1, B, H), jnp.float32)
    c0 = jax.random.normal(kc, (1, B, H), jnp.float32)
    params = init_params(kp, E, H, V)

    logp, (h_n, c_n) = rnn_decoder_forward(x, h0, c0, params)
    jax.block_until_ready((logp, h_n, c_n))

    logp_ref, (h_ref, c_ref) = rnn_decoder_reference(x, h0, c0, params)
    np.testing.assert_allclose(np.asarray(logp), np.asarray(logp_ref),
                               rtol=1e-4, atol=1e-4)
    np.testing.assert_allclose(np.asarray(h_n), np.asarray(h_ref),
                               rtol=1e-4, atol=1e-4)
    np.testing.assert_allclose(np.asarray(c_n), np.asarray(c_ref),
                               rtol=1e-4, atol=1e-4)

    print("KERNEL_OK")
</pallas_src>

<mosaic_0001>
module attributes {stable_mosaic.version = 11 : i64} {
  func.func @_rnn_decoder_kernel(%arg0: i32, %arg1: memref<8x8x128xf32, #tpu.memory_space<vmem>>, %arg2: memref<8x32xf32, #tpu.memory_space<vmem>>, %arg3: memref<8x32xf32, #tpu.memory_space<vmem>>, %arg4: memref<32x128xf32, #tpu.memory_space<vmem>>, %arg5: memref<32x128xf32, #tpu.memory_space<vmem>>, %arg6: memref<1x128xf32, #tpu.memory_space<vmem>>, %arg7: memref<8x128xf32, #tpu.memory_space<vmem>>, %arg8: memref<8x32xf32, #tpu.memory_space<vmem>>, %arg9: memref<8x32xf32, #tpu.memory_space<vmem>>) attributes {dimension_semantics = [#tpu.dimension_semantics<arbitrary>], iteration_bounds = array<i64: 1>, scalar_prefetch = 0 : i64, scratch_operands = 0 : i64, tpu.core_type = #tpu.core_type<tc>, window_params = [{pipeline_mode = #tpu.pipeline_mode<synchronous>, transform_indices = @transform_0, window_bounds = array<i64: 8, 8, 128>}, {pipeline_mode = #tpu.pipeline_mode<synchronous>, transform_indices = @transform_1, window_bounds = array<i64: 8, 32>}, {pipeline_mode = #tpu.pipeline_mode<synchronous>, transform_indices = @transform_2, window_bounds = array<i64: 8, 32>}, {pipeline_mode = #tpu.pipeline_mode<synchronous>, transform_indices = @transform_3, window_bounds = array<i64: 32, 128>}, {pipeline_mode = #tpu.pipeline_mode<synchronous>, transform_indices = @transform_4, window_bounds = array<i64: 32, 128>}, {pipeline_mode = #tpu.pipeline_mode<synchronous>, transform_indices = @transform_5, window_bounds = array<i64: 1, 128>}, {pipeline_mode = #tpu.pipeline_mode<synchronous>, transform_indices = @transform_6, window_bounds = array<i64: 8, 128>}, {pipeline_mode = #tpu.pipeline_mode<synchronous>, transform_indices = @transform_7, window_bounds = array<i64: 8, 32>}, {pipeline_mode = #tpu.pipeline_mode<synchronous>, transform_indices = @transform_8, window_bounds = array<i64: 8, 32>}]} {
    %c0 = arith.constant 0 : index
    %c0_0 = arith.constant 0 : index
    %0 = vector.load %arg4[%c0, %c0_0] : memref<32x128xf32, #tpu.memory_space<vmem>>, vector<32x128xf32>
    %c0_1 = arith.constant 0 : index
    %c0_2 = arith.constant 0 : index
    %1 = vector.load %arg2[%c0_1, %c0_2] : memref<8x32xf32, #tpu.memory_space<vmem>>, vector<8x32xf32>
    %c0_3 = arith.constant 0 : index
    %c0_4 = arith.constant 0 : index
    %2 = vector.load %arg3[%c0_3, %c0_4] : memref<8x32xf32, #tpu.memory_space<vmem>>, vector<8x32xf32>
    %c0_i32 = arith.constant 0 : i32
    %3 = arith.index_cast %c0_i32 : i32 to index
    %c0_5 = arith.constant 0 : index
    %c0_6 = arith.constant 0 : index
    %4 = vector.load %arg1[%3, %c0_5, %c0_6] : memref<8x8x128xf32, #tpu.memory_space<vmem>>, vector<1x8x128xf32>
    %5 = vector.shape_cast %4 : vector<1x8x128xf32> to vector<8x128xf32>
    %cst = arith.constant dense<0.000000e+00> : vector<8x128xf32>
    %6 = tpu.matmul %1, %0, %cst {dimension_numbers = #tpu.dot_dimension_numbers<[1], [0], [0], [1], [0, 0, 1, 1], [], []>} : vector<8x32xf32>, vector<32x128xf32>, vector<8x128xf32> -> vector<8x128xf32>
    %7 = arith.addf %5, %6 : vector<8x128xf32>
    %8 = vector.extract_strided_slice %7 {offsets = [0, 0], sizes = [8, 96], strides = [1, 1]} : vector<8x128xf32> to vector<8x96xf32>
    %9 = arith.negf %8 : vector<8x96xf32>
    %10 = math.exp %9 : vector<8x96xf32>
    %cst_7 = arith.constant 1.000000e+00 : f32
    %11 = vector.broadcast %cst_7 : f32 to vector<8x96xf32>
    %12 = arith.addf %11, %10 : vector<8x96xf32>
    %13 = arith.divf %11, %12 : vector<8x96xf32>
    %14 = vector.extract_strided_slice %7 {offsets = [0, 96], sizes = [8, 32], strides = [1, 1]} : vector<8x128xf32> to vector<8x32xf32>
    %15 = math.tanh %14 : vector<8x32xf32>
    %16 = vector.extract_strided_slice %13 {offsets = [0, 0], sizes = [8, 32], strides = [1, 1]} : vector<8x96xf32> to vector<8x32xf32>
    %17 = vector.extract_strided_slice %13 {offsets = [0, 32], sizes = [8, 32], strides = [1, 1]} : vector<8x96xf32> to vector<8x32xf32>
    %18 = vector.extract_strided_slice %13 {offsets = [0, 64], sizes = [8, 32], strides = [1, 1]} : vector<8x96xf32> to vector<8x32xf32>
    %19 = arith.mulf %17, %2 : vector<8x32xf32>
    %20 = arith.mulf %16, %15 : vector<8x32xf32>
    %21 = arith.addf %19, %20 : vector<8x32xf32>
    %22 = math.tanh %21 : vector<8x32xf32>
    %23 = arith.mulf %18, %22 : vector<8x32xf32>
    %c1_i32 = arith.constant 1 : i32
    %24 = arith.index_cast %c1_i32 : i32 to index
    %c0_8 = arith.constant 0 : index
    %c0_9 = arith.constant 0 : index
    %25 = vector.load %arg1[%24, %c0_8, %c0_9] : memref<8x8x128xf32, #tpu.memory_space<vmem>>, vector<1x8x128xf32>
    %26 = vector.shape_cast %25 : vector<1x8x128xf32> to vector<8x128xf32>
    %cst_10 = arith.constant dense<0.000000e+00> : vector<8x128xf32>
    %27 = tpu.matmul %23, %0, %cst_10 {dimension_numbers = #tpu.dot_dimension_numbers<[1], [0], [0], [1], [0, 0, 1, 1], [], []>} : vector<8x32xf32>, vector<32x128xf32>, vector<8x128xf32> -> vector<8x128xf32>
    %28 = arith.addf %26, %27 : vector<8x128xf32>
    %29 = vector.extract_strided_slice %28 {offsets = [0, 0], sizes = [8, 96], strides = [1, 1]} : vector<8x128xf32> to vector<8x96xf32>
    %30 = arith.negf %29 : vector<8x96xf32>
    %31 = math.exp %30 : vector<8x96xf32>
    %cst_11 = arith.constant 1.000000e+00 : f32
    %32 = vector.broadcast %cst_11 : f32 to vector<8x96xf32>
    %33 = arith.addf %32, %31 : vector<8x96xf32>
    %34 = arith.divf %32, %33 : vector<8x96xf32>
    %35 = vector.extract_strided_slice %28 {offsets = [0, 96], sizes = [8, 32], strides = [1, 1]} : vector<8x128xf32> to vector<8x32xf32>
    %36 = math.tanh %35 : vector<8x32xf32>
    %37 = vector.extract_strided_slice %34 {offsets = [0, 0], sizes = [8, 32], strides = [1, 1]} : vector<8x96xf32> to vector<8x32xf32>
    %38 = vector.extract_strided_slice %34 {offsets = [0, 32], sizes = [8, 32], strides = [1, 1]} : vector<8x96xf32> to vector<8x32xf32>
    %39 = vector.extract_strided_slice %34 {offsets = [0, 64], sizes = [8, 32], strides = [1, 1]} : vector<8x96xf32> to vector<8x32xf32>
    %40 = arith.mulf %38, %21 : vector<8x32xf32>
    %41 = arith.mulf %37, %36 : vector<8x32xf32>
    %42 = arith.addf %40, %41 : vector<8x32xf32>
    %43 = math.tanh %42 : vector<8x32xf32>
    %44 = arith.mulf %39, %43 : vector<8x32xf32>
    %c2_i32 = arith.constant 2 : i32
    %45 = arith.index_cast %c2_i32 : i32 to index
    %c0_12 = arith.constant 0 : index
    %c0_13 = arith.constant 0 : index
    %46 = vector.load %arg1[%45, %c0_12, %c0_13] : memref<8x8x128xf32, #tpu.memory_space<vmem>>, vector<1x8x128xf32>
    %47 = vector.shape_cast %46 : vector<1x8x128xf32> to vector<8x128xf32>
    %cst_14 = arith.constant dense<0.000000e+00> : vector<8x128xf32>
    %48 = tpu.matmul %44, %0, %cst_14 {dimension_numbers = #tpu.dot_dimension_numbers<[1], [0], [0], [1], [0, 0, 1, 1], [], []>} : vector<8x32xf32>, vector<32x128xf32>, vector<8x128xf32> -> vector<8x128xf32>
    %49 = arith.addf %47, %48 : vector<8x128xf32>
    %50 = vector.extract_strided_slice %49 {offsets = [0, 0], sizes = [8, 96], strides = [1, 1]} : vector<8x128xf32> to vector<8x96xf32>
    %51 = arith.negf %50 : vector<8x96xf32>
    %52 = math.exp %51 : vector<8x96xf32>
    %cst_15 = arith.constant 1.000000e+00 : f32
    %53 = vector.broadcast %cst_15 : f32 to vector<8x96xf32>
    %54 = arith.addf %53, %52 : vector<8x96xf32>
    %55 = arith.divf %53, %54 : vector<8x96xf32>
    %56 = vector.extract_strided_slice %49 {offsets = [0, 96], sizes = [8, 32], strides = [1, 1]} : vector<8x128xf32> to vector<8x32xf32>
    %57 = math.tanh %56 : vector<8x32xf32>
    %58 = vector.extract_strided_slice %55 {offsets = [0, 0], sizes = [8, 32], strides = [1, 1]} : vector<8x96xf32> to vector<8x32xf32>
    %59 = vector.extract_strided_slice %55 {offsets = [0, 32], sizes = [8, 32], strides = [1, 1]} : vector<8x96xf32> to vector<8x32xf32>
    %60 = vector.extract_strided_slice %55 {offsets = [0, 64], sizes = [8, 32], strides = [1, 1]} : vector<8x96xf32> to vector<8x32xf32>
    %61 = arith.mulf %59, %42 : vector<8x32xf32>
    %62 = arith.mulf %58, %57 : vector<8x32xf32>
    %63 = arith.addf %61, %62 : vector<8x32xf32>
    %64 = math.tanh %63 : vector<8x32xf32>
    %65 = arith.mulf %60, %64 : vector<8x32xf32>
    %c3_i32 = arith.constant 3 : i32
    %66 = arith.index_cast %c3_i32 : i32 to index
    %c0_16 = arith.constant 0 : index
    %c0_17 = arith.constant 0 : index
    %67 = vector.load %arg1[%66, %c0_16, %c0_17] : memref<8x8x128xf32, #tpu.memory_space<vmem>>, vector<1x8x128xf32>
    %68 = vector.shape_cast %67 : vector<1x8x128xf32> to vector<8x128xf32>
    %cst_18 = arith.constant dense<0.000000e+00> : vector<8x128xf32>
    %69 = tpu.matmul %65, %0, %cst_18 {dimension_numbers = #tpu.dot_dimension_numbers<[1], [0], [0], [1], [0, 0, 1, 1], [], []>} : vector<8x32xf32>, vector<32x128xf32>, vector<8x128xf32> -> vector<8x128xf32>
    %70 = arith.addf %68, %69 : vector<8x128xf32>
    %71 = vector.extract_strided_slice %70 {offsets = [0, 0], sizes = [8, 96], strides = [1, 1]} : vector<8x128xf32> to vector<8x96xf32>
    %72 = arith.negf %71 : vector<8x96xf32>
    %73 = math.exp %72 : vector<8x96xf32>
    %cst_19 = arith.constant 1.000000e+00 : f32
    %74 = vector.broadcast %cst_19 : f32 to vector<8x96xf32>
    %75 = arith.addf %74, %73 : vector<8x96xf32>
    %76 = arith.divf %74, %75 : vector<8x96xf32>
    %77 = vector.extract_strided_slice %70 {offsets = [0, 96], sizes = [8, 32], strides = [1, 1]} : vector<8x128xf32> to vector<8x32xf32>
    %78 = math.tanh %77 : vector<8x32xf32>
    %79 = vector.extract_strided_slice %76 {offsets = [0, 0], sizes = [8, 32], strides = [1, 1]} : vector<8x96xf32> to vector<8x32xf32>
    %80 = vector.extract_strided_slice %76 {offsets = [0, 32], sizes = [8, 32], strides = [1, 1]} : vector<8x96xf32> to vector<8x32xf32>
    %81 = vector.extract_strided_slice %76 {offsets = [0, 64], sizes = [8, 32], strides = [1, 1]} : vector<8x96xf32> to vector<8x32xf32>
    %82 = arith.mulf %80, %63 : vector<8x32xf32>
    %83 = arith.mulf %79, %78 : vector<8x32xf32>
    %84 = arith.addf %82, %83 : vector<8x32xf32>
    %85 = math.tanh %84 : vector<8x32xf32>
    %86 = arith.mulf %81, %85 : vector<8x32xf32>
    %c4_i32 = arith.constant 4 : i32
    %87 = arith.index_cast %c4_i32 : i32 to index
    %c0_20 = arith.constant 0 : index
    %c0_21 = arith.constant 0 : index
    %88 = vector.load %arg1[%87, %c0_20, %c0_21] : memref<8x8x128xf32, #tpu.memory_space<vmem>>, vector<1x8x128xf32>
    %89 = vector.shape_cast %88 : vector<1x8x128xf32> to vector<8x128xf32>
    %cst_22 = arith.constant dense<0.000000e+00> : vector<8x128xf32>
    %90 = tpu.matmul %86, %0, %cst_22 {dimension_numbers = #tpu.dot_dimension_numbers<[1], [0], [0], [1], [0, 0, 1, 1], [], []>} : vector<8x32xf32>, vector<32x128xf32>, vector<8x128xf32> -> vector<8x128xf32>
    %91 = arith.addf %89, %90 : vector<8x128xf32>
    %92 = vector.extract_strided_slice %91 {offsets = [0, 0], sizes = [8, 96], strides = [1, 1]} : vector<8x128xf32> to vector<8x96xf32>
    %93 = arith.negf %92 : vector<8x96xf32>
    %94 = math.exp %93 : vector<8x96xf32>
    %cst_23 = arith.constant 1.000000e+00 : f32
    %95 = vector.broadcast %cst_23 : f32 to vector<8x96xf32>
    %96 = arith.addf %95, %94 : vector<8x96xf32>
    %97 = arith.divf %95, %96 : vector<8x96xf32>
    %98 = vector.extract_strided_slice %91 {offsets = [0, 96], sizes = [8, 32], strides = [1, 1]} : vector<8x128xf32> to vector<8x32xf32>
    %99 = math.tanh %98 : vector<8x32xf32>
    %100 = vector.extract_strided_slice %97 {offsets = [0, 0], sizes = [8, 32], strides = [1, 1]} : vector<8x96xf32> to vector<8x32xf32>
    %101 = vector.extract_strided_slice %97 {offsets = [0, 32], sizes = [8, 32], strides = [1, 1]} : vector<8x96xf32> to vector<8x32xf32>
    %102 = vector.extract_strided_slice %97 {offsets = [0, 64], sizes = [8, 32], strides = [1, 1]} : vector<8x96xf32> to vector<8x32xf32>
    %103 = arith.mulf %101, %84 : vector<8x32xf32>
    %104 = arith.mulf %100, %99 : vector<8x32xf32>
    %105 = arith.addf %103, %104 : vector<8x32xf32>
    %106 = math.tanh %105 : vector<8x32xf32>
    %107 = arith.mulf %102, %106 : vector<8x32xf32>
    %c5_i32 = arith.constant 5 : i32
    %108 = arith.index_cast %c5_i32 : i32 to index
    %c0_24 = arith.constant 0 : index
    %c0_25 = arith.constant 0 : index
    %109 = vector.load %arg1[%108, %c0_24, %c0_25] : memref<8x8x128xf32, #tpu.memory_space<vmem>>, vector<1x8x128xf32>
    %110 = vector.shape_cast %109 : vector<1x8x128xf32> to vector<8x128xf32>
    %cst_26 = arith.constant dense<0.000000e+00> : vector<8x128xf32>
    %111 = tpu.matmul %107, %0, %cst_26 {dimension_numbers = #tpu.dot_dimension_numbers<[1], [0], [0], [1], [0, 0, 1, 1], [], []>} : vector<8x32xf32>, vector<32x128xf32>, vector<8x128xf32> -> vector<8x128xf32>
    %112 = arith.addf %110, %111 : vector<8x128xf32>
    %113 = vector.extract_strided_slice %112 {offsets = [0, 0], sizes = [8, 96], strides = [1, 1]} : vector<8x128xf32> to vector<8x96xf32>
    %114 = arith.negf %113 : vector<8x96xf32>
    %115 = math.exp %114 : vector<8x96xf32>
    %cst_27 = arith.constant 1.000000e+00 : f32
    %116 = vector.broadcast %cst_27 : f32 to vector<8x96xf32>
    %117 = arith.addf %116, %115 : vector<8x96xf32>
    %118 = arith.divf %116, %117 : vector<8x96xf32>
    %119 = vector.extract_strided_slice %112 {offsets = [0, 96], sizes = [8, 32], strides = [1, 1]} : vector<8x128xf32> to vector<8x32xf32>
    %120 = math.tanh %119 : vector<8x32xf32>
    %121 = vector.extract_strided_slice %118 {offsets = [0, 0], sizes = [8, 32], strides = [1, 1]} : vector<8x96xf32> to vector<8x32xf32>
    %122 = vector.extract_strided_slice %118 {offsets = [0, 32], sizes = [8, 32], strides = [1, 1]} : vector<8x96xf32> to vector<8x32xf32>
    %123 = vector.extract_strided_slice %118 {offsets = [0, 64], sizes = [8, 32], strides = [1, 1]} : vector<8x96xf32> to vector<8x32xf32>
    %124 = arith.mulf %122, %105 : vector<8x32xf32>
    %125 = arith.mulf %121, %120 : vector<8x32xf32>
    %126 = arith.addf %124, %125 : vector<8x32xf32>
    %127 = math.tanh %126 : vector<8x32xf32>
    %128 = arith.mulf %123, %127 : vector<8x32xf32>
    %c6_i32 = arith.constant 6 : i32
    %129 = arith.index_cast %c6_i32 : i32 to index
    %c0_28 = arith.constant 0 : index
    %c0_29 = arith.constant 0 : index
    %130 = vector.load %arg1[%129, %c0_28, %c0_29] : memref<8x8x128xf32, #tpu.memory_space<vmem>>, vector<1x8x128xf32>
    %131 = vector.shape_cast %130 : vector<1x8x128xf32> to vector<8x128xf32>
    %cst_30 = arith.constant dense<0.000000e+00> : vector<8x128xf32>
    %132 = tpu.matmul %128, %0, %cst_30 {dimension_numbers = #tpu.dot_dimension_numbers<[1], [0], [0], [1], [0, 0, 1, 1], [], []>} : vector<8x32xf32>, vector<32x128xf32>, vector<8x128xf32> -> vector<8x128xf32>
    %133 = arith.addf %131, %132 : vector<8x128xf32>
    %134 = vector.extract_strided_slice %133 {offsets = [0, 0], sizes = [8, 96], strides = [1, 1]} : vector<8x128xf32> to vector<8x96xf32>
    %135 = arith.negf %134 : vector<8x96xf32>
    %136 = math.exp %135 : vector<8x96xf32>
    %cst_31 = arith.constant 1.000000e+00 : f32
    %137 = vector.broadcast %cst_31 : f32 to vector<8x96xf32>
    %138 = arith.addf %137, %136 : vector<8x96xf32>
    %139 = arith.divf %137, %138 : vector<8x96xf32>
    %140 = vector.extract_strided_slice %133 {offsets = [0, 96], sizes = [8, 32], strides = [1, 1]} : vector<8x128xf32> to vector<8x32xf32>
    %141 = math.tanh %140 : vector<8x32xf32>
    %142 = vector.extract_strided_slice %139 {offsets = [0, 0], sizes = [8, 32], strides = [1, 1]} : vector<8x96xf32> to vector<8x32xf32>
    %143 = vector.extract_strided_slice %139 {offsets = [0, 32], sizes = [8, 32], strides = [1, 1]} : vector<8x96xf32> to vector<8x32xf32>
    %144 = vector.extract_strided_slice %139 {offsets = [0, 64], sizes = [8, 32], strides = [1, 1]} : vector<8x96xf32> to vector<8x32xf32>
    %145 = arith.mulf %143, %126 : vector<8x32xf32>
    %146 = arith.mulf %142, %141 : vector<8x32xf32>
    %147 = arith.addf %145, %146 : vector<8x32xf32>
    %148 = math.tanh %147 : vector<8x32xf32>
    %149 = arith.mulf %144, %148 : vector<8x32xf32>
    %c7_i32 = arith.constant 7 : i32
    %150 = arith.index_cast %c7_i32 : i32 to index
    %c0_32 = arith.constant 0 : index
    %c0_33 = arith.constant 0 : index
    %151 = vector.load %arg1[%150, %c0_32, %c0_33] : memref<8x8x128xf32, #tpu.memory_space<vmem>>, vector<1x8x128xf32>
    %152 = vector.shape_cast %151 : vector<1x8x128xf32> to vector<8x128xf32>
    %cst_34 = arith.constant dense<0.000000e+00> : vector<8x128xf32>
    %153 = tpu.matmul %149, %0, %cst_34 {dimension_numbers = #tpu.dot_dimension_numbers<[1], [0], [0], [1], [0, 0, 1, 1], [], []>} : vector<8x32xf32>, vector<32x128xf32>, vector<8x128xf32> -> vector<8x128xf32>
    %154 = arith.addf %152, %153 : vector<8x128xf32>
    %155 = vector.extract_strided_slice %154 {offsets = [0, 0], sizes = [8, 96], strides = [1, 1]} : vector<8x128xf32> to vector<8x96xf32>
    %156 = arith.negf %155 : vector<8x96xf32>
    %157 = math.exp %156 : vector<8x96xf32>
    %cst_35 = arith.constant 1.000000e+00 : f32
    %158 = vector.broadcast %cst_35 : f32 to vector<8x96xf32>
    %159 = arith.addf %158, %157 : vector<8x96xf32>
    %160 = arith.divf %158, %159 : vector<8x96xf32>
    %161 = vector.extract_strided_slice %154 {offsets = [0, 96], sizes = [8, 32], strides = [1, 1]} : vector<8x128xf32> to vector<8x32xf32>
    %162 = math.tanh %161 : vector<8x32xf32>
    %163 = vector.extract_strided_slice %160 {offsets = [0, 0], sizes = [8, 32], strides = [1, 1]} : vector<8x96xf32> to vector<8x32xf32>
    %164 = vector.extract_strided_slice %160 {offsets = [0, 32], sizes = [8, 32], strides = [1, 1]} : vector<8x96xf32> to vector<8x32xf32>
    %165 = vector.extract_strided_slice %160 {offsets = [0, 64], sizes = [8, 32], strides = [1, 1]} : vector<8x96xf32> to vector<8x32xf32>
    %166 = arith.mulf %164, %147 : vector<8x32xf32>
    %167 = arith.mulf %163, %162 : vector<8x32xf32>
    %168 = arith.addf %166, %167 : vector<8x32xf32>
    %169 = math.tanh %168 : vector<8x32xf32>
    %170 = arith.mulf %165, %169 : vector<8x32xf32>
    %c8_i32 = arith.constant 8 : i32
    %c0_36 = arith.constant 0 : index
    %c0_37 = arith.constant 0 : index
    %171 = vector.load %arg8[%c0_36, %c0_37] : memref<8x32xf32, #tpu.memory_space<vmem>>, vector<8x32xf32>
    tpu.vector_store %arg8[%c0_36, %c0_37], %170 {strides = array<i32>} : memref<8x32xf32, #tpu.memory_space<vmem>>, vector<8x32xf32>,
    %c0_38 = arith.constant 0 : index
    %c0_39 = arith.constant 0 : index
    %172 = vector.load %arg9[%c0_38, %c0_39] : memref<8x32xf32, #tpu.memory_space<vmem>>, vector<8x32xf32>
    tpu.vector_store %arg9[%c0_38, %c0_39], %168 {strides = array<i32>} : memref<8x32xf32, #tpu.memory_space<vmem>>, vector<8x32xf32>,
    %c0_40 = arith.constant 0 : index
    %c0_41 = arith.constant 0 : index
    %173 = vector.load %arg5[%c0_40, %c0_41] : memref<32x128xf32, #tpu.memory_space<vmem>>, vector<32x128xf32>
    %cst_42 = arith.constant dense<0.000000e+00> : vector<8x128xf32>
    %174 = tpu.matmul %170, %173, %cst_42 {dimension_numbers = #tpu.dot_dimension_numbers<[1], [0], [0], [1], [0, 0, 1, 1], [], []>} : vector<8x32xf32>, vector<32x128xf32>, vector<8x128xf32> -> vector<8x128xf32>
    %c0_43 = arith.constant 0 : index
    %c0_44 = arith.constant 0 : index
    %175 = vector.load %arg6[%c0_43, %c0_44] : memref<1x128xf32, #tpu.memory_space<vmem>>, vector<1x128xf32>
    %176 = vector.broadcast %175 : vector<1x128xf32> to vector<8x128xf32>
    %177 = arith.addf %174, %176 : vector<8x128xf32>
    %cst_45 = arith.constant dense<0xFF800000> : vector<8xf32>
    %178 = vector.multi_reduction <maximumf>, %177, %cst_45 [1] : vector<8x128xf32> to vector<8xf32>
    %179 = vector.shape_cast %178 : vector<8xf32> to vector<8x1xf32>
    %180 = vector.broadcast %179 : vector<8x1xf32> to vector<8x128xf32>
    %181 = arith.subf %177, %180 : vector<8x128xf32>
    %182 = math.exp %181 : vector<8x128xf32>
    %cst_46 = arith.constant dense<0.000000e+00> : vector<8xf32>
    %183 = vector.multi_reduction <add>, %182, %cst_46 [1] : vector<8x128xf32> to vector<8xf32>
    %184 = vector.shape_cast %183 : vector<8xf32> to vector<8x1xf32>
    %185 = math.log %184 : vector<8x1xf32>
    %186 = vector.broadcast %185 : vector<8x1xf32> to vector<8x128xf32>
    %187 = arith.subf %181, %186 : vector<8x128xf32>
    %c0_47 = arith.constant 0 : index
    %c0_48 = arith.constant 0 : index
    %188 = vector.load %arg7[%c0_47, %c0_48] : memref<8x128xf32, #tpu.memory_space<vmem>>, vector<8x128xf32>
    tpu.vector_store %arg7[%c0_47, %c0_48], %187 {strides = array<i32>} : memref<8x128xf32, #tpu.memory_space<vmem>>, vector<8x128xf32>,
    return
  }
  func.func @transform_0(%arg0: i32) -> (i32, i32, i32) {
    %c0_i32 = arith.constant 0 : i32
    %c0_i32_0 = arith.constant 0 : i32
    %c0_i32_1 = arith.constant 0 : i32
    %c0_i32_2 = arith.constant 0 : i32
    return %c0_i32, %c0_i32_0, %c0_i32_1 : i32, i32, i32
  }
  func.func @transform_1(%arg0: i32) -> (i32, i32) {
    %c0_i32 = arith.constant 0 : i32
    %c0_i32_0 = arith.constant 0 : i32
    %c0_i32_1 = arith.constant 0 : i32
    return %c0_i32, %c0_i32_0 : i32, i32
  }
  func.func @transform_2(%arg0: i32) -> (i32, i32) {
    %c0_i32 = arith.constant 0 : i32
    %c0_i32_0 = arith.constant 0 : i32
    %c0_i32_1 = arith.constant 0 : i32
    return %c0_i32, %c0_i32_0 : i32, i32
  }
  func.func @transform_3(%arg0: i32) -> (i32, i32) {
    %c0_i32 = arith.constant 0 : i32
    %c0_i32_0 = arith.constant 0 : i32
    %c0_i32_1 = arith.constant 0 : i32
    return %c0_i32, %c0_i32_0 : i32, i32
  }
  func.func @transform_4(%arg0: i32) -> (i32, i32) {
    %c0_i32 = arith.constant 0 : i32
    %c0_i32_0 = arith.constant 0 : i32
    %c0_i32_1 = arith.constant 0 : i32
    return %c0_i32, %c0_i32_0 : i32, i32
  }
  func.func @transform_5(%arg0: i32) -> (i32, i32) {
    %c0_i32 = arith.constant 0 : i32
    %c0_i32_0 = arith.constant 0 : i32
    %c0_i32_1 = arith.constant 0 : i32
    return %c0_i32, %c0_i32_0 : i32, i32
  }
  func.func @transform_6(%arg0: i32) -> (i32, i32) {
    %c0_i32 = arith.constant 0 : i32
    %c0_i32_0 = arith.constant 0 : i32
    %c0_i32_1 = arith.constant 0 : i32
    return %c0_i32, %c0_i32_0 : i32, i32
  }
  func.func @transform_7(%arg0: i32) -> (i32, i32) {
    %c0_i32 = arith.constant 0 : i32
    %c0_i32_0 = arith.constant 0 : i32
    %c0_i32_1 = arith.constant 0 : i32
    return %c0_i32, %c0_i32_0 : i32, i32
  }
  func.func @transform_8(%arg0: i32) -> (i32, i32) {
    %c0_i32 = arith.constant 0 : i32
    %c0_i32_0 = arith.constant 0 : i32
    %c0_i32_1 = arith.constant 0 : i32
    return %c0_i32, %c0_i32_0 : i32, i32
  }
}

</mosaic_0001>

<llo_original>
// kernel: rnn_decoder_forward.1
$region0: #{rnn_decoder_forward.1}
  #allocation0 [shape = 'u32[]', space=smem, size = 0x4, offset = 0x4, fixed_abs, tag = 'smem constant byte address 0x4 - core index']
  #allocation1 [shape = 'u32[144,128]{1,0:T(1,128)}', space=vmem, size = 0x12000, scoped, tag = 'internal scratch']
  %s0 = inlined_call_operand.vmem [shape: f32[8,8,128], index: 0, kind: input, shape index: {}]
  %s1 = inlined_call_operand.vmem [shape: f32[8,32], index: 1, kind: input, shape index: {}]
  %s2 = inlined_call_operand.vmem [shape: f32[8,32], index: 2, kind: input, shape index: {}]
  %s3 = inlined_call_operand.vmem [shape: f32[32,128], index: 3, kind: input, shape index: {}]
  %s4 = inlined_call_operand.vmem [shape: f32[32,128], index: 4, kind: input, shape index: {}]
  %s5 = inlined_call_operand.vmem [shape: f32[1,128], index: 5, kind: input, shape index: {}]
  %s6 = inlined_call_operand.vmem [shape: f32[8,128], index: 6, kind: output, shape index: {0}]
  %s7 = inlined_call_operand.vmem [shape: f32[8,32], index: 7, kind: output, shape index: {1}]
  %s8 = inlined_call_operand.vmem [shape: f32[8,32], index: 8, kind: output, shape index: {2}]
  %9 = xla_tuple %s6, %s7, %s8
  %s10 = sld [smem:[#allocation0]]
  $region50: #{rnn_decoder_forward.1} parent=0
    _
  %s12 = ssub.s32 1, %s10
  %s13 = scalar_select 0, %s12, %s10
  // Predicated region
  $region2: #{rnn_decoder_forward.1} parent=0 // pred_check
    _
  $region3: #{rnn_decoder_forward.1} parent=0 // pred_check_branch
    %15 = sbr.rel (0) target = $region5
  $region4: #{rnn_decoder_forward.1} parent=0 // pred_region
    _
  $region5: #{rnn_decoder_forward.1} parent=0 // pred_fallthru
    _
  // Predicated region
  $region6: #{rnn_decoder_forward.1} parent=0 // pred_check
    _
  $region7: #{rnn_decoder_forward.1} parent=0 // pred_check_branch
    %17 = sbr.rel (0) target = $region9
  $region8: #{rnn_decoder_forward.1} parent=0 // pred_region
    _
  $region9: #{rnn_decoder_forward.1} parent=0 // pred_fallthru
    _
  // Predicated region
  $region10: #{rnn_decoder_forward.1} parent=0 // pred_check
    _
  $region11: #{rnn_decoder_forward.1} parent=0 // pred_check_branch
    %19 = sbr.rel (0) target = $region13
  $region12: #{rnn_decoder_forward.1} parent=0 // pred_region
    _
  $region13: #{rnn_decoder_forward.1} parent=0 // pred_fallthru
    _
  // Predicated region
  $region14: #{rnn_decoder_forward.1} parent=0 // pred_check
    _
  $region15: #{rnn_decoder_forward.1} parent=0 // pred_check_branch
    %21 = sbr.rel (0) target = $region17
  $region16: #{rnn_decoder_forward.1} parent=0 // pred_region
    _
  $region17: #{rnn_decoder_forward.1} parent=0 // pred_fallthru
    _
  // Predicated region
  $region18: #{rnn_decoder_forward.1} parent=0 // pred_check
    _
  $region19: #{rnn_decoder_forward.1} parent=0 // pred_check_branch
    %23 = sbr.rel (0) target = $region21
  $region20: #{rnn_decoder_forward.1} parent=0 // pred_region
    _
  $region21: #{rnn_decoder_forward.1} parent=0 // pred_fallthru
    _
  // Predicated region
  $region22: #{rnn_decoder_forward.1} parent=0 // pred_check
    _
  $region23: #{rnn_decoder_forward.1} parent=0 // pred_check_branch
    %25 = sbr.rel (0) target = $region25
  $region24: #{rnn_decoder_forward.1} parent=0 // pred_region
    _
  $region25: #{rnn_decoder_forward.1} parent=0 // pred_fallthru
    _
  %v26 = vld [vmem:[%s3] sm:$0xff]
  %v27 = vld [vmem:[%s3 + $0x8] sm:$0xff]
  %v28 = vld [vmem:[%s3 + $0x10] sm:$0xff]
  %v29 = vld [vmem:[%s3 + $0x18] sm:$0xff]
  %v30 = vld [vmem:[%s1] sm:$0xff]
  %v31 = vld [vmem:[%s2] sm:$0xff]
  %v32 = vld [vmem:[%s0] sm:$0xff]
  %vm33 = vcmask 261120
  %v35 = vsel %vm33, %v30, 0
  %37 = vmatprep.subr.mxu0 0.0
  %38 = vmatpush1.msra.mxu0 %v26
  %39 = vmatprep.subr.mxu0 0.0
  %40 = vmatpush1.msra.mxu0 %v27
  %41 = vmatprep.subr.mxu0 0.0
  %42 = vmatpush1.msra.mxu0 %v28
  %43 = vmatprep.subr.mxu0 0.0
  %44 = vmatpush1.msra.mxu0 %v29
  %45 = vmatprep.subr.mxu0 0.0
  %46 = vmatpush1.msra.mxu0 0.0
  %47 = vmatprep.subr.mxu0 0.0
  %48 = vmatpush1.msra.mxu0 0.0
  %49 = vmatprep.subr.mxu0 0.0
  %50 = vmatpush1.msra.mxu0 0.0
  %51 = vmatprep.subr.mxu0 0.0
  %52 = vmatpush1.msra.mxu0 0.0
  %53 = vmatprep.subr.mxu0 0.0
  %54 = vmatpush1.msra.mxu0 0.0
  %55 = vmatprep.subr.mxu0 0.0
  %56 = vmatpush1.msra.mxu0 0.0
  %57 = vmatprep.subr.mxu0 0.0
  %58 = vmatpush1.msra.mxu0 0.0
  %59 = vmatprep.subr.mxu0 0.0
  %60 = vmatpush1.msra.mxu0 0.0
  %61 = vmatprep.subr.mxu0 0.0
  %62 = vmatpush1.msra.mxu0 0.0
  %63 = vmatprep.subr.mxu0 0.0
  %64 = vmatpush1.msra.mxu0 0.0
  %65 = vmatprep.subr.mxu0 0.0
  %66 = vmatpush1.msra.mxu0 0.0
  %67 = vmatprep.subr.mxu0 0.0
  %68 = vmatpush1.msra.mxu0 0.0
  %69 = vmatprep.subr.mxu0 0.0
  %70 = vmatpush1.msra.mxu0 0.0
  %71 = vmatprep.subr.mxu0 0.0
  %72 = vmatpush1.msra.mxu0 0.0
  %73 = vmatprep.subr.mxu0 0.0
  %74 = vmatpush1.msra.mxu0 0.0
  %75 = vmatprep.subr.mxu0 0.0
  %76 = vmatpush1.msra.mxu0 0.0
  %77 = vmatprep.subr.mxu0 0.0
  %78 = vmatpush1.msra.mxu0 0.0
  %79 = vmatprep.subr.mxu0 0.0
  %80 = vmatpush1.msra.mxu0 0.0
  %81 = vmatprep.subr.mxu0 0.0
  %82 = vmatpush1.msra.mxu0 0.0
  %83 = vmatprep.subr.mxu0 0.0
  %84 = vmatpush1.msra.mxu0 0.0
  %85 = vmatprep.subr.mxu0 0.0
  %86 = vmatpush1.msra.mxu0 0.0
  %87 = vmatprep.subr.mxu0 0.0
  %88 = vmatpush1.msra.mxu0 0.0
  %89 = vmatprep.subr.mxu0 0.0
  %90 = vmatpush1.msra.mxu0 0.0
  %91 = vmatprep.subr.mxu0 0.0
  %92 = vmatpush1.msra.mxu0 0.0
  %93 = vmatprep.subr.mxu0 0.0
  %94 = vmatpush1.msra.mxu0 0.0
  %95 = vmatprep.subr.mxu0 0.0
  %96 = vmatpush1.msra.mxu0 0.0
  %97 = vmatprep.subr.mxu0 0.0
  %98 = vmatpush1.msra.mxu0 0.0
  %99 = vmatprep.subr.mxu0 0.0
  %100 = vmatpush1.msra.mxu0 0.0
  %101 = vmatprep.mubr.f32.mxu0 0.0
  %102 = vmatmul.mubr.f32.gmra.mrb[0].mxu0 %v35
  %v103 = vpop.f32.mrb[0].mxu0
  %v104 = vadd.f32 0.0, %v103
  %v105 = vpop.f32.mrb[0].mxu0
  %106 = vdwg.mxu0
  %v107 = vadd.f32 %v32, %v104
  %v108 = vxor.u32 %v107, 2147483648
  %v109 = vmul.f32 %v108, 1.442695
  %v110 = vpow.pop %v109
  %v111 = vadd.f32 %v110, 1.0
  %v112 = vrcp.pop %v111
  %v113 = vmul.f32 1.0, %v112
  %v114 = vtanh.pop %v107
  %116 = vrot.lane.b32.xlu0 %v31, 32
  %v117 = vpop.permute.xlu0 %116
  %v119 = vmul.f32 %v113, %v117
  %121 = vrot.lane.b32.xlu0 %v114, 32
  %v122 = vpop.permute.xlu0 %121
  %v124 = vmul.f32 %v113, %v122
  %126 = vrot.lane.b32.xlu0 %v124, 32
  %v127 = vpop.permute.xlu0 %126
  %v129 = vadd.f32 %v119, %v127
  %v130 = vtanh.pop %v129
  %132 = vrot.lane.b32.xlu0 %v130, 32
  %v133 = vpop.permute.xlu0 %132
  %v135 = vmul.f32 %v113, %v133
  %s136 = scalar_lea.vmem %s0, 8
  %v137 = vld [vmem:[%s136] sm:$0xff]
  %139 = vrot.lane.b32.xlu0 %v135, 64
  %v140 = vpop.permute.xlu0 %139
  %v141 = vsel %vm33, %v140, 0
  %143 = vmatprep.subr.mxu0 0.0
  %144 = vmatpush1.msra.mxu0 %v26
  %145 = vmatprep.subr.mxu0 0.0
  %146 = vmatpush1.msra.mxu0 %v27
  %147 = vmatprep.subr.mxu0 0.0
  %148 = vmatpush1.msra.mxu0 %v28
  %149 = vmatprep.subr.mxu0 0.0
  %150 = vmatpush1.msra.mxu0 %v29
  %151 = vmatprep.subr.mxu0 0.0
  %152 = vmatpush1.msra.mxu0 0.0
  %153 = vmatprep.subr.mxu0 0.0
  %154 = vmatpush1.msra.mxu0 0.0
  %155 = vmatprep.subr.mxu0 0.0
  %156 = vmatpush1.msra.mxu0 0.0
  %157 = vmatprep.subr.mxu0 0.0
  %158 = vmatpush1.msra.mxu0 0.0
  %159 = vmatprep.subr.mxu0 0.0
  %160 = vmatpush1.msra.mxu0 0.0
  %161 = vmatprep.subr.mxu0 0.0
  %162 = vmatpush1.msra.mxu0 0.0
  %163 = vmatprep.subr.mxu0 0.0
  %164 = vmatpush1.msra.mxu0 0.0
  %165 = vmatprep.subr.mxu0 0.0
  %166 = vmatpush1.msra.mxu0 0.0
  %167 = vmatprep.subr.mxu0 0.0
  %168 = vmatpush1.msra.mxu0 0.0
  %169 = vmatprep.subr.mxu0 0.0
  %170 = vmatpush1.msra.mxu0 0.0
  %171 = vmatprep.subr.mxu0 0.0
  %172 = vmatpush1.msra.mxu0 0.0
  %173 = vmatprep.subr.mxu0 0.0
  %174 = vmatpush1.msra.mxu0 0.0
  %175 = vmatprep.subr.mxu0 0.0
  %176 = vmatpush1.msra.mxu0 0.0
  %177 = vmatprep.subr.mxu0 0.0
  %178 = vmatpush1.msra.mxu0 0.0
  %179 = vmatprep.subr.mxu0 0.0
  %180 = vmatpush1.msra.mxu0 0.0
  %181 = vmatprep.subr.mxu0 0.0
  %182 = vmatpush1.msra.mxu0 0.0
  %183 = vmatprep.subr.mxu0 0.0
  %184 = vmatpush1.msra.mxu0 0.0
  %185 = vmatprep.subr.mxu0 0.0
  %186 = vmatpush1.msra.mxu0 0.0
  %187 = vmatprep.subr.mxu0 0.0
  %188 = vmatpush1.msra.mxu0 0.0
  %189 = vmatprep.subr.mxu0 0.0
  %190 = vmatpush1.msra.mxu0 0.0
  %191 = vmatprep.subr.mxu0 0.0
  %192 = vmatpush1.msra.mxu0 0.0
  %193 = vmatprep.subr.mxu0 0.0
  %194 = vmatpush1.msra.mxu0 0.0
  %195 = vmatprep.subr.mxu0 0.0
  %196 = vmatpush1.msra.mxu0 0.0
  %197 = vmatprep.subr.mxu0 0.0
  %198 = vmatpush1.msra.mxu0 0.0
  %199 = vmatprep.subr.mxu0 0.0
  %200 = vmatpush1.msra.mxu0 0.0
  %201 = vmatprep.subr.mxu0 0.0
  %202 = vmatpush1.msra.mxu0 0.0
  %203 = vmatprep.subr.mxu0 0.0
  %204 = vmatpush1.msra.mxu0 0.0
  %205 = vmatprep.subr.mxu0 0.0
  %206 = vmatpush1.msra.mxu0 0.0
  %207 = vmatprep.mubr.f32.mxu0 0.0
  %208 = vmatmul.mubr.f32.gmra.mrb[0].mxu0 %v141
  %v209 = vpop.f32.mrb[0].mxu0
  %v210 = vadd.f32 0.0, %v209
  %v211 = vpop.f32.mrb[0].mxu0
  %212 = vdwg.mxu0
  %v213 = vadd.f32 %v137, %v210
  %v214 = vxor.u32 %v213, 2147483648
  %v215 = vmul.f32 %v214, 1.442695
  %v216 = vpow.pop %v215
  %v217 = vadd.f32 %v216, 1.0
  %v218 = vrcp.pop %v217
  %v219 = vmul.f32 1.0, %v218
  %v220 = vtanh.pop %v213
  %v221 = vmul.f32 %v219, %v129
  %223 = vrot.lane.b32.xlu0 %v220, 32
  %v224 = vpop.permute.xlu0 %223
  %v226 = vmul.f32 %v219, %v224
  %228 = vrot.lane.b32.xlu0 %v226, 32
  %v229 = vpop.permute.xlu0 %228
  %v231 = vadd.f32 %v221, %v229
  %v232 = vtanh.pop %v231
  %234 = vrot.lane.b32.xlu0 %v232, 32
  %v235 = vpop.permute.xlu0 %234
  %v237 = vmul.f32 %v219, %v235
  %s238 = scalar_lea.vmem %s0, 16
  %v239 = vld [vmem:[%s238] sm:$0xff]
  %241 = vrot.lane.b32.xlu0 %v237, 64
  %v242 = vpop.permute.xlu0 %241
  %v243 = vsel %vm33, %v242, 0
  %245 = vmatprep.subr.mxu0 0.0
  %246 = vmatpush1.msra.mxu0 %v26
  %247 = vmatprep.subr.mxu0 0.0
  %248 = vmatpush1.msra.mxu0 %v27
  %249 = vmatprep.subr.mxu0 0.0
  %250 = vmatpush1.msra.mxu0 %v28
  %251 = vmatprep.subr.mxu0 0.0
  %252 = vmatpush1.msra.mxu0 %v29
  %253 = vmatprep.subr.mxu0 0.0
  %254 = vmatpush1.msra.mxu0 0.0
  %255 = vmatprep.subr.mxu0 0.0
  %256 = vmatpush1.msra.mxu0 0.0
  %257 = vmatprep.subr.mxu0 0.0
  %258 = vmatpush1.msra.mxu0 0.0
  %259 = vmatprep.subr.mxu0 0.0
  %260 = vmatpush1.msra.mxu0 0.0
  %261 = vmatprep.subr.mxu0 0.0
  %262 = vmatpush1.msra.mxu0 0.0
  %263 = vmatprep.subr.mxu0 0.0
  %264 = vmatpush1.msra.mxu0 0.0
  %265 = vmatprep.subr.mxu0 0.0
  %266 = vmatpush1.msra.mxu0 0.0
  %267 = vmatprep.subr.mxu0 0.0
  %268 = vmatpush1.msra.mxu0 0.0
  %269 = vmatprep.subr.mxu0 0.0
  %270 = vmatpush1.msra.mxu0 0.0
  %271 = vmatprep.subr.mxu0 0.0
  %272 = vmatpush1.msra.mxu0 0.0
  %273 = vmatprep.subr.mxu0 0.0
  %274 = vmatpush1.msra.mxu0 0.0
  %275 = vmatprep.subr.mxu0 0.0
  %276 = vmatpush1.msra.mxu0 0.0
  %277 = vmatprep.subr.mxu0 0.0
  %278 = vmatpush1.msra.mxu0 0.0
  %279 = vmatprep.subr.mxu0 0.0
  %280 = vmatpush1.msra.mxu0 0.0
  %281 = vmatprep.subr.mxu0 0.0
  %282 = vmatpush1.msra.mxu0 0.0
  %283 = vmatprep.subr.mxu0 0.0
  %284 = vmatpush1.msra.mxu0 0.0
  %285 = vmatprep.subr.mxu0 0.0
  %286 = vmatpush1.msra.mxu0 0.0
  %287 = vmatprep.subr.mxu0 0.0
  %288 = vmatpush1.msra.mxu0 0.0
  %289 = vmatprep.subr.mxu0 0.0
  %290 = vmatpush1.msra.mxu0 0.0
  %291 = vmatprep.subr.mxu0 0.0
  %292 = vmatpush1.msra.mxu0 0.0
  %293 = vmatprep.subr.mxu0 0.0
  %294 = vmatpush1.msra.mxu0 0.0
  %295 = vmatprep.subr.mxu0 0.0
  %296 = vmatpush1.msra.mxu0 0.0
  %297 = vmatprep.subr.mxu0 0.0
  %298 = vmatpush1.msra.mxu0 0.0
  %299 = vmatprep.subr.mxu0 0.0
  %300 = vmatpush1.msra.mxu0 0.0
  %301 = vmatprep.subr.mxu0 0.0
  %302 = vmatpush1.msra.mxu0 0.0
  %303 = vmatprep.subr.mxu0 0.0
  %304 = vmatpush1.msra.mxu0 0.0
  %305 = vmatprep.subr.mxu0 0.0
  %306 = vmatpush1.msra.mxu0 0.0
  %307 = vmatprep.subr.mxu0 0.0
  %308 = vmatpush1.msra.mxu0 0.0
  %309 = vmatprep.mubr.f32.mxu0 0.0
  %310 = vmatmul.mubr.f32.gmra.mrb[0].mxu0 %v243
  %v311 = vpop.f32.mrb[0].mxu0
  %v312 = vadd.f32 0.0, %v311
  %v313 = vpop.f32.mrb[0].mxu0
  %314 = vdwg.mxu0
  %v315 = vadd.f32 %v239, %v312
  %v316 = vxor.u32 %v315, 2147483648
  %v317 = vmul.f32 %v316, 1.442695
  %v318 = vpow.pop %v317
  %v319 = vadd.f32 %v318, 1.0
  %v320 = vrcp.pop %v319
  %v321 = vmul.f32 1.0, %v320
  %v322 = vtanh.pop %v315
  %v323 = vmul.f32 %v321, %v231
  %325 = vrot.lane.b32.xlu0 %v322, 32
  %v326 = vpop.permute.xlu0 %325
  %v328 = vmul.f32 %v321, %v326
  %330 = vrot.lane.b32.xlu0 %v328, 32
  %v331 = vpop.permute.xlu0 %330
  %v333 = vadd.f32 %v323, %v331
  %v334 = vtanh.pop %v333
  %336 = vrot.lane.b32.xlu0 %v334, 32
  %v337 = vpop.permute.xlu0 %336
  %v339 = vmul.f32 %v321, %v337
  %s340 = scalar_lea.vmem %s0, 24
  %v341 = vld [vmem:[%s340] sm:$0xff]
  %343 = vrot.lane.b32.xlu0 %v339, 64
  %v344 = vpop.permute.xlu0 %343
  %v345 = vsel %vm33, %v344, 0
  %347 = vmatprep.subr.mxu0 0.0
  %348 = vmatpush1.msra.mxu0 %v26
  %349 = vmatprep.subr.mxu0 0.0
  %350 = vmatpush1.msra.mxu0 %v27
  %351 = vmatprep.subr.mxu0 0.0
  %352 = vmatpush1.msra.mxu0 %v28
  %353 = vmatprep.subr.mxu0 0.0
  %354 = vmatpush1.msra.mxu0 %v29
  %355 = vmatprep.subr.mxu0 0.0
  %356 = vmatpush1.msra.mxu0 0.0
  %357 = vmatprep.subr.mxu0 0.0
  %358 = vmatpush1.msra.mxu0 0.0
  %359 = vmatprep.subr.mxu0 0.0
  %360 = vmatpush1.msra.mxu0 0.0
  %361 = vmatprep.subr.mxu0 0.0
  %362 = vmatpush1.msra.mxu0 0.0
  %363 = vmatprep.subr.mxu0 0.0
  %364 = vmatpush1.msra.mxu0 0.0
  %365 = vmatprep.subr.mxu0 0.0
  %366 = vmatpush1.msra.mxu0 0.0
  %367 = vmatprep.subr.mxu0 0.0
  %368 = vmatpush1.msra.mxu0 0.0
  %369 = vmatprep.subr.mxu0 0.0
  %370 = vmatpush1.msra.mxu0 0.0
  %371 = vmatprep.subr.mxu0 0.0
  %372 = vmatpush1.msra.mxu0 0.0
  %373 = vmatprep.subr.mxu0 0.0
  %374 = vmatpush1.msra.mxu0 0.0
  %375 = vmatprep.subr.mxu0 0.0
  %376 = vmatpush1.msra.mxu0 0.0
  %377 = vmatprep.subr.mxu0 0.0
  %378 = vmatpush1.msra.mxu0 0.0
  %379 = vmatprep.subr.mxu0 0.0
  %380 = vmatpush1.msra.mxu0 0.0
  %381 = vmatprep.subr.mxu0 0.0
  %382 = vmatpush1.msra.mxu0 0.0
  %383 = vmatprep.subr.mxu0 0.0
  %384 = vmatpush1.msra.mxu0 0.0
  %385 = vmatprep.subr.mxu0 0.0
  %386 = vmatpush1.msra.mxu0 0.0
  %387 = vmatprep.subr.mxu0 0.0
  %388 = vmatpush1.msra.mxu0 0.0
  %389 = vmatprep.subr.mxu0 0.0
  %390 = vmatpush1.msra.mxu0 0.0
  %391 = vmatprep.subr.mxu0 0.0
  %392 = vmatpush1.msra.mxu0 0.0
  %393 = vmatprep.subr.mxu0 0.0
  %394 = vmatpush1.msra.mxu0 0.0
  %395 = vmatprep.subr.mxu0 0.0
  %396 = vmatpush1.msra.mxu0 0.0
  %397 = vmatprep.subr.mxu0 0.0
  %398 = vmatpush1.msra.mxu0 0.0
  %399 = vmatprep.subr.mxu0 0.0
  %400 = vmatpush1.msra.mxu0 0.0
  %401 = vmatprep.subr.mxu0 0.0
  %402 = vmatpush1.msra.mxu0 0.0
  %403 = vmatprep.subr.mxu0 0.0
  %404 = vmatpush1.msra.mxu0 0.0
  %405 = vmatprep.subr.mxu0 0.0
  %406 = vmatpush1.msra.mxu0 0.0
  %407 = vmatprep.subr.mxu0 0.0
  %408 = vmatpush1.msra.mxu0 0.0
  %409 = vmatprep.subr.mxu0 0.0
  %410 = vmatpush1.msra.mxu0 0.0
  %411 = vmatprep.mubr.f32.mxu0 0.0
  %412 = vmatmul.mubr.f32.gmra.mrb[0].mxu0 %v345
  %v413 = vpop.f32.mrb[0].mxu0
  %v414 = vadd.f32 0.0, %v413
  %v415 = vpop.f32.mrb[0].mxu0
  %416 = vdwg.mxu0
  %v417 = vadd.f32 %v341, %v414
  %v418 = vxor.u32 %v417, 2147483648
  %v419 = vmul.f32 %v418, 1.442695
  %v420 = vpow.pop %v419
  %v421 = vadd.f32 %v420, 1.0
  %v422 = vrcp.pop %v421
  %v423 = vmul.f32 1.0, %v422
  %v424 = vtanh.pop %v417
  %v425 = vmul.f32 %v423, %v333
  %427 = vrot.lane.b32.xlu0 %v424, 32
  %v428 = vpop.permute.xlu0 %427
  %v430 = vmul.f32 %v423, %v428
  %432 = vrot.lane.b32.xlu0 %v430, 32
  %v433 = vpop.permute.xlu0 %432
  %v435 = vadd.f32 %v425, %v433
  %v436 = vtanh.pop %v435
  %438 = vrot.lane.b32.xlu0 %v436, 32
  %v439 = vpop.permute.xlu0 %438
  %v441 = vmul.f32 %v423, %v439
  %s442 = scalar_lea.vmem %s0, 32
  %v443 = vld [vmem:[%s442] sm:$0xff]
  %445 = vrot.lane.b32.xlu0 %v441, 64
  %v446 = vpop.permute.xlu0 %445
  %v447 = vsel %vm33, %v446, 0
  %449 = vmatprep.subr.mxu0 0.0
  %450 = vmatpush1.msra.mxu0 %v26
  %451 = vmatprep.subr.mxu0 0.0
  %452 = vmatpush1.msra.mxu0 %v27
  %453 = vmatprep.subr.mxu0 0.0
  %454 = vmatpush1.msra.mxu0 %v28
  %455 = vmatprep.subr.mxu0 0.0
  %456 = vmatpush1.msra.mxu0 %v29
  %457 = vmatprep.subr.mxu0 0.0
  %458 = vmatpush1.msra.mxu0 0.0
  %459 = vmatprep.subr.mxu0 0.0
  %460 = vmatpush1.msra.mxu0 0.0
  %461 = vmatprep.subr.mxu0 0.0
  %462 = vmatpush1.msra.mxu0 0.0
  %463 = vmatprep.subr.mxu0 0.0
  %464 = vmatpush1.msra.mxu0 0.0
  %465 = vmatprep.subr.mxu0 0.0
  %466 = vmatpush1.msra.mxu0 0.0
  %467 = vmatprep.subr.mxu0 0.0
  %468 = vmatpush1.msra.mxu0 0.0
  %469 = vmatprep.subr.mxu0 0.0
  %470 = vmatpush1.msra.mxu0 0.0
  %471 = vmatprep.subr.mxu0 0.0
  %472 = vmatpush1.msra.mxu0 0.0
  %473 = vmatprep.subr.mxu0 0.0
  %474 = vmatpush1.msra.mxu0 0.0
  %475 = vmatprep.subr.mxu0 0.0
  %476 = vmatpush1.msra.mxu0 0.0
  %477 = vmatprep.subr.mxu0 0.0
  %478 = vmatpush1.msra.mxu0 0.0
  %479 = vmatprep.subr.mxu0 0.0
  %480 = vmatpush1.msra.mxu0 0.0
  %481 = vmatprep.subr.mxu0 0.0
  %482 = vmatpush1.msra.mxu0 0.0
  %483 = vmatprep.subr.mxu0 0.0
  %484 = vmatpush1.msra.mxu0 0.0
  %485 = vmatprep.subr.mxu0 0.0
  %486 = vmatpush1.msra.mxu0 0.0
  %487 = vmatprep.subr.mxu0 0.0
  %488 = vmatpush1.msra.mxu0 0.0
  %489 = vmatprep.subr.mxu0 0.0
  %490 = vmatpush1.msra.mxu0 0.0
  %491 = vmatprep.subr.mxu0 0.0
  %492 = vmatpush1.msra.mxu0 0.0
  %493 = vmatprep.subr.mxu0 0.0
  %494 = vmatpush1.msra.mxu0 0.0
  %495 = vmatprep.subr.mxu0 0.0
  %496 = vmatpush1.msra.mxu0 0.0
  %497 = vmatprep.subr.mxu0 0.0
  %498 = vmatpush1.msra.mxu0 0.0
  %499 = vmatprep.subr.mxu0 0.0
  %500 = vmatpush1.msra.mxu0 0.0
  %501 = vmatprep.subr.mxu0 0.0
  %502 = vmatpush1.msra.mxu0 0.0
  %503 = vmatprep.subr.mxu0 0.0
  %504 = vmatpush1.msra.mxu0 0.0
  %505 = vmatprep.subr.mxu0 0.0
  %506 = vmatpush1.msra.mxu0 0.0
  %507 = vmatprep.subr.mxu0 0.0
  %508 = vmatpush1.msra.mxu0 0.0
  %509 = vmatprep.subr.mxu0 0.0
  %510 = vmatpush1.msra.mxu0 0.0
  %511 = vmatprep.subr.mxu0 0.0
  %512 = vmatpush1.msra.mxu0 0.0
  %513 = vmatprep.mubr.f32.mxu0 0.0
  %514 = vmatmul.mubr.f32.gmra.mrb[0].mxu0 %v447
  %v515 = vpop.f32.mrb[0].mxu0
  %v516 = vadd.f32 0.0, %v515
  %v517 = vpop.f32.mrb[0].mxu0
  %518 = vdwg.mxu0
  %v519 = vadd.f32 %v443, %v516
  %v520 = vxor.u32 %v519, 2147483648
  %v521 = vmul.f32 %v520, 1.442695
  %v522 = vpow.pop %v521
  %v523 = vadd.f32 %v522, 1.0
  %v524 = vrcp.pop %v523
  %v525 = vmul.f32 1.0, %v524
  %v526 = vtanh.pop %v519
  %v527 = vmul.f32 %v525, %v435
  %529 = vrot.lane.b32.xlu0 %v526, 32
  %v530 = vpop.permute.xlu0 %529
  %v532 = vmul.f32 %v525, %v530
  %534 = vrot.lane.b32.xlu0 %v532, 32
  %v535 = vpop.permute.xlu0 %534
  %v537 = vadd.f32 %v527, %v535
  %v538 = vtanh.pop %v537
  %540 = vrot.lane.b32.xlu0 %v538, 32
  %v541 = vpop.permute.xlu0 %540
  %v543 = vmul.f32 %v525, %v541
  %s544 = scalar_lea.vmem %s0, 40
  %v545 = vld [vmem:[%s544] sm:$0xff]
  %547 = vrot.lane.b32.xlu0 %v543, 64
  %v548 = vpop.permute.xlu0 %547
  %v549 = vsel %vm33, %v548, 0
  %551 = vmatprep.subr.mxu0 0.0
  %552 = vmatpush1.msra.mxu0 %v26
  %553 = vmatprep.subr.mxu0 0.0
  %554 = vmatpush1.msra.mxu0 %v27
  %555 = vmatprep.subr.mxu0 0.0
  %556 = vmatpush1.msra.mxu0 %v28
  %557 = vmatprep.subr.mxu0 0.0
  %558 = vmatpush1.msra.mxu0 %v29
  %559 = vmatprep.subr.mxu0 0.0
  %560 = vmatpush1.msra.mxu0 0.0
  %561 = vmatprep.subr.mxu0 0.0
  %562 = vmatpush1.msra.mxu0 0.0
  %563 = vmatprep.subr.mxu0 0.0
  %564 = vmatpush1.msra.mxu0 0.0
  %565 = vmatprep.subr.mxu0 0.0
  %566 = vmatpush1.msra.mxu0 0.0
  %567 = vmatprep.subr.mxu0 0.0
  %568 = vmatpush1.msra.mxu0 0.0
  %569 = vmatprep.subr.mxu0 0.0
  %570 = vmatpush1.msra.mxu0 0.0
  %571 = vmatprep.subr.mxu0 0.0
  %572 = vmatpush1.msra.mxu0 0.0
  %573 = vmatprep.subr.mxu0 0.0
  %574 = vmatpush1.msra.mxu0 0.0
  %575 = vmatprep.subr.mxu0 0.0
  %576 = vmatpush1.msra.mxu0 0.0
  %577 = vmatprep.subr.mxu0 0.0
  %578 = vmatpush1.msra.mxu0 0.0
  %579 = vmatprep.subr.mxu0 0.0
  %580 = vmatpush1.msra.mxu0 0.0
  %581 = vmatprep.subr.mxu0 0.0
  %582 = vmatpush1.msra.mxu0 0.0
  %583 = vmatprep.subr.mxu0 0.0
  %584 = vmatpush1.msra.mxu0 0.0
  %585 = vmatprep.subr.mxu0 0.0
  %586 = vmatpush1.msra.mxu0 0.0
  %587 = vmatprep.subr.mxu0 0.0
  %588 = vmatpush1.msra.mxu0 0.0
  %589 = vmatprep.subr.mxu0 0.0
  %590 = vmatpush1.msra.mxu0 0.0
  %591 = vmatprep.subr.mxu0 0.0
  %592 = vmatpush1.msra.mxu0 0.0
  %593 = vmatprep.subr.mxu0 0.0
  %594 = vmatpush1.msra.mxu0 0.0
  %595 = vmatprep.subr.mxu0 0.0
  %596 = vmatpush1.msra.mxu0 0.0
  %597 = vmatprep.subr.mxu0 0.0
  %598 = vmatpush1.msra.mxu0 0.0
  %599 = vmatprep.subr.mxu0 0.0
  %600 = vmatpush1.msra.mxu0 0.0
  %601 = vmatprep.subr.mxu0 0.0
  %602 = vmatpush1.msra.mxu0 0.0
  %603 = vmatprep.subr.mxu0 0.0
  %604 = vmatpush1.msra.mxu0 0.0
  %605 = vmatprep.subr.mxu0 0.0
  %606 = vmatpush1.msra.mxu0 0.0
  %607 = vmatprep.subr.mxu0 0.0
  %608 = vmatpush1.msra.mxu0 0.0
  %609 = vmatprep.subr.mxu0 0.0
  %610 = vmatpush1.msra.mxu0 0.0
  %611 = vmatprep.subr.mxu0 0.0
  %612 = vmatpush1.msra.mxu0 0.0
  %613 = vmatprep.subr.mxu0 0.0
  %614 = vmatpush1.msra.mxu0 0.0
  %615 = vmatprep.mubr.f32.mxu0 0.0
  %616 = vmatmul.mubr.f32.gmra.mrb[0].mxu0 %v549
  %v617 = vpop.f32.mrb[0].mxu0
  %v618 = vadd.f32 0.0, %v617
  %v619 = vpop.f32.mrb[0].mxu0
  %620 = vdwg.mxu0
  %v621 = vadd.f32 %v545, %v618
  %v622 = vxor.u32 %v621, 2147483648
  %v623 = vmul.f32 %v622, 1.442695
  %v624 = vpow.pop %v623
  %v625 = vadd.f32 %v624, 1.0
  %v626 = vrcp.pop %v625
  %v627 = vmul.f32 1.0, %v626
  %v628 = vtanh.pop %v621
  %v629 = vmul.f32 %v627, %v537
  %631 = vrot.lane.b32.xlu0 %v628, 32
  %v632 = vpop.permute.xlu0 %631
  %v634 = vmul.f32 %v627, %v632
  %636 = vrot.lane.b32.xlu0 %v634, 32
  %v637 = vpop.permute.xlu0 %636
  %v639 = vadd.f32 %v629, %v637
  %v640 = vtanh.pop %v639
  %642 = vrot.lane.b32.xlu0 %v640, 32
  %v643 = vpop.permute.xlu0 %642
  %v645 = vmul.f32 %v627, %v643
  %s646 = scalar_lea.vmem %s0, 48
  %v647 = vld [vmem:[%s646] sm:$0xff]
  %649 = vrot.lane.b32.xlu0 %v645, 64
  %v650 = vpop.permute.xlu0 %649
  %v651 = vsel %vm33, %v650, 0
  %653 = vmatprep.subr.mxu0 0.0
  %654 = vmatpush1.msra.mxu0 %v26
  %655 = vmatprep.subr.mxu0 0.0
  %656 = vmatpush1.msra.mxu0 %v27
  %657 = vmatprep.subr.mxu0 0.0
  %658 = vmatpush1.msra.mxu0 %v28
  %659 = vmatprep.subr.mxu0 0.0
  %660 = vmatpush1.msra.mxu0 %v29
  %661 = vmatprep.subr.mxu0 0.0
  %662 = vmatpush1.msra.mxu0 0.0
  %663 = vmatprep.subr.mxu0 0.0
  %664 = vmatpush1.msra.mxu0 0.0
  %665 = vmatprep.subr.mxu0 0.0
  %666 = vmatpush1.msra.mxu0 0.0
  %667 = vmatprep.subr.mxu0 0.0
  %668 = vmatpush1.msra.mxu0 0.0
  %669 = vmatprep.subr.mxu0 0.0
  %670 = vmatpush1.msra.mxu0 0.0
  %671 = vmatprep.subr.mxu0 0.0
  %672 = vmatpush1.msra.mxu0 0.0
  %673 = vmatprep.subr.mxu0 0.0
  %674 = vmatpush1.msra.mxu0 0.0
  %675 = vmatprep.subr.mxu0 0.0
  %676 = vmatpush1.msra.mxu0 0.0
  %677 = vmatprep.subr.mxu0 0.0
  %678 = vmatpush1.msra.mxu0 0.0
  %679 = vmatprep.subr.mxu0 0.0
  %680 = vmatpush1.msra.mxu0 0.0
  %681 = vmatprep.subr.mxu0 0.0
  %682 = vmatpush1.msra.mxu0 0.0
  %683 = vmatprep.subr.mxu0 0.0
  %684 = vmatpush1.msra.mxu0 0.0
  %685 = vmatprep.subr.mxu0 0.0
  %686 = vmatpush1.msra.mxu0 0.0
  %687 = vmatprep.subr.mxu0 0.0
  %688 = vmatpush1.msra.mxu0 0.0
  %689 = vmatprep.subr.mxu0 0.0
  %690 = vmatpush1.msra.mxu0 0.0
  %691 = vmatprep.subr.mxu0 0.0
  %692 = vmatpush1.msra.mxu0 0.0
  %693 = vmatprep.subr.mxu0 0.0
  %694 = vmatpush1.msra.mxu0 0.0
  %695 = vmatprep.subr.mxu0 0.0
  %696 = vmatpush1.msra.mxu0 0.0
  %697 = vmatprep.subr.mxu0 0.0
  %698 = vmatpush1.msra.mxu0 0.0
  %699 = vmatprep.subr.mxu0 0.0
  %700 = vmatpush1.msra.mxu0 0.0
  %701 = vmatprep.subr.mxu0 0.0
  %702 = vmatpush1.msra.mxu0 0.0
  %703 = vmatprep.subr.mxu0 0.0
  %704 = vmatpush1.msra.mxu0 0.0
  %705 = vmatprep.subr.mxu0 0.0
  %706 = vmatpush1.msra.mxu0 0.0
  %707 = vmatprep.subr.mxu0 0.0
  %708 = vmatpush1.msra.mxu0 0.0
  %709 = vmatprep.subr.mxu0 0.0
  %710 = vmatpush1.msra.mxu0 0.0
  %711 = vmatprep.subr.mxu0 0.0
  %712 = vmatpush1.msra.mxu0 0.0
  %713 = vmatprep.subr.mxu0 0.0
  %714 = vmatpush1.msra.mxu0 0.0
  %715 = vmatprep.subr.mxu0 0.0
  %716 = vmatpush1.msra.mxu0 0.0
  %717 = vmatprep.mubr.f32.mxu0 0.0
  %718 = vmatmul.mubr.f32.gmra.mrb[0].mxu0 %v651
  %v719 = vpop.f32.mrb[0].mxu0
  %v720 = vadd.f32 0.0, %v719
  %v721 = vpop.f32.mrb[0].mxu0
  %722 = vdwg.mxu0
  %v723 = vadd.f32 %v647, %v720
  %v724 = vxor.u32 %v723, 2147483648
  %v725 = vmul.f32 %v724, 1.442695
  %v726 = vpow.pop %v725
  %v727 = vadd.f32 %v726, 1.0
  %v728 = vrcp.pop %v727
  %v729 = vmul.f32 1.0, %v728
  %v730 = vtanh.pop %v723
  %v731 = vmul.f32 %v729, %v639
  %733 = vrot.lane.b32.xlu0 %v730, 32
  %v734 = vpop.permute.xlu0 %733
  %v736 = vmul.f32 %v729, %v734
  %738 = vrot.lane.b32.xlu0 %v736, 32
  %v739 = vpop.permute.xlu0 %738
  %v741 = vadd.f32 %v731, %v739
  %v742 = vtanh.pop %v741
  %744 = vrot.lane.b32.xlu0 %v742, 32
  %v745 = vpop.permute.xlu0 %744
  %v747 = vmul.f32 %v729, %v745
  %s748 = scalar_lea.vmem %s0, 56
  %v749 = vld [vmem:[%s748] sm:$0xff]
  %751 = vrot.lane.b32.xlu0 %v747, 64
  %v752 = vpop.permute.xlu0 %751
  %v753 = vsel %vm33, %v752, 0
  %755 = vmatprep.subr.mxu0 0.0
  %756 = vmatpush1.msra.mxu0 %v26
  %757 = vmatprep.subr.mxu0 0.0
  %758 = vmatpush1.msra.mxu0 %v27
  %759 = vmatprep.subr.mxu0 0.0
  %760 = vmatpush1.msra.mxu0 %v28
  %761 = vmatprep.subr.mxu0 0.0
  %762 = vmatpush1.msra.mxu0 %v29
  %763 = vmatprep.subr.mxu0 0.0
  %764 = vmatpush1.msra.mxu0 0.0
  %765 = vmatprep.subr.mxu0 0.0
  %766 = vmatpush1.msra.mxu0 0.0
  %767 = vmatprep.subr.mxu0 0.0
  %768 = vmatpush1.msra.mxu0 0.0
  %769 = vmatprep.subr.mxu0 0.0
  %770 = vmatpush1.msra.mxu0 0.0
  %771 = vmatprep.subr.mxu0 0.0
  %772 = vmatpush1.msra.mxu0 0.0
  %773 = vmatprep.subr.mxu0 0.0
  %774 = vmatpush1.msra.mxu0 0.0
  %775 = vmatprep.subr.mxu0 0.0
  %776 = vmatpush1.msra.mxu0 0.0
  %777 = vmatprep.subr.mxu0 0.0
  %778 = vmatpush1.msra.mxu0 0.0
  %779 = vmatprep.subr.mxu0 0.0
  %780 = vmatpush1.msra.mxu0 0.0
  %781 = vmatprep.subr.mxu0 0.0
  %782 = vmatpush1.msra.mxu0 0.0
  %783 = vmatprep.subr.mxu0 0.0
  %784 = vmatpush1.msra.mxu0 0.0
  %785 = vmatprep.subr.mxu0 0.0
  %786 = vmatpush1.msra.mxu0 0.0
  %787 = vmatprep.subr.mxu0 0.0
  %788 = vmatpush1.msra.mxu0 0.0
  %789 = vmatprep.subr.mxu0 0.0
  %790 = vmatpush1.msra.mxu0 0.0
  %791 = vmatprep.subr.mxu0 0.0
  %792 = vmatpush1.msra.mxu0 0.0
  %793 = vmatprep.subr.mxu0 0.0
  %794 = vmatpush1.msra.mxu0 0.0
  %795 = vmatprep.subr.mxu0 0.0
  %796 = vmatpush1.msra.mxu0 0.0
  %797 = vmatprep.subr.mxu0 0.0
  %798 = vmatpush1.msra.mxu0 0.0
  %799 = vmatprep.subr.mxu0 0.0
  %800 = vmatpush1.msra.mxu0 0.0
  %801 = vmatprep.subr.mxu0 0.0
  %802 = vmatpush1.msra.mxu0 0.0
  %803 = vmatprep.subr.mxu0 0.0
  %804 = vmatpush1.msra.mxu0 0.0
  %805 = vmatprep.subr.mxu0 0.0
  %806 = vmatpush1.msra.mxu0 0.0
  %807 = vmatprep.subr.mxu0 0.0
  %808 = vmatpush1.msra.mxu0 0.0
  %809 = vmatprep.subr.mxu0 0.0
  %810 = vmatpush1.msra.mxu0 0.0
  %811 = vmatprep.subr.mxu0 0.0
  %812 = vmatpush1.msra.mxu0 0.0
  %813 = vmatprep.subr.mxu0 0.0
  %814 = vmatpush1.msra.mxu0 0.0
  %815 = vmatprep.subr.mxu0 0.0
  %816 = vmatpush1.msra.mxu0 0.0
  %817 = vmatprep.subr.mxu0 0.0
  %818 = vmatpush1.msra.mxu0 0.0
  %819 = vmatprep.mubr.f32.mxu0 0.0
  %820 = vmatmul.mubr.f32.gmra.mrb[0].mxu0 %v753
  %v821 = vpop.f32.mrb[0].mxu0
  %v822 = vadd.f32 0.0, %v821
  %v823 = vpop.f32.mrb[0].mxu0
  %824 = vdwg.mxu0
  %v825 = vadd.f32 %v749, %v822
  %v826 = vxor.u32 %v825, 2147483648
  %v827 = vmul.f32 %v826, 1.442695
  %v828 = vpow.pop %v827
  %v829 = vadd.f32 %v828, 1.0
  %v830 = vrcp.pop %v829
  %v831 = vmul.f32 1.0, %v830
  %v832 = vtanh.pop %v825
  %v833 = vmul.f32 %v831, %v741
  %835 = vrot.lane.b32.xlu0 %v832, 32
  %v836 = vpop.permute.xlu0 %835
  %v838 = vmul.f32 %v831, %v836
  %840 = vrot.lane.b32.xlu0 %v838, 32
  %v841 = vpop.permute.xlu0 %840
  %v843 = vadd.f32 %v833, %v841
  %v844 = vtanh.pop %v843
  %846 = vrot.lane.b32.xlu0 %v844, 32
  %v847 = vpop.permute.xlu0 %846
  %v849 = vmul.f32 %v831, %v847
  %851 = vrot.lane.b32.xlu0 %v849, 64
  %v852 = vpop.permute.xlu0 %851
  %854 = vst.msk [vmem:[%s7] sm:$0xff] %vm33, %v852
  %856 = vrot.lane.b32.xlu0 %v843, 96
  %v857 = vpop.permute.xlu0 %856
  %859 = vst.msk [vmem:[%s8] sm:$0xff] %vm33, %v857
  %v860 = vld [vmem:[%s4] sm:$0xff]
  %v861 = vld [vmem:[%s4 + $0x8] sm:$0xff]
  %v862 = vld [vmem:[%s4 + $0x10] sm:$0xff]
  %v863 = vld [vmem:[%s4 + $0x18] sm:$0xff]
  %v864 = vld [vmem:[%s5] sm:$0x1]
  %v866 = vlaneseq
  %v867 = vshrl.u32 %v866, 7
  %v868 = vsub.s32 0, %v867
  %v869 = vrot.slane %v864, %v868
  %v871 = vsel %vm33, %v852, 0
  %873 = vmatprep.subr.mxu0 0.0
  %874 = vmatpush1.msra.mxu0 %v860
  %875 = vmatprep.subr.mxu0 0.0
  %876 = vmatpush1.msra.mxu0 %v861
  %877 = vmatprep.subr.mxu0 0.0
  %878 = vmatpush1.msra.mxu0 %v862
  %879 = vmatprep.subr.mxu0 0.0
  %880 = vmatpush1.msra.mxu0 %v863
  %881 = vmatprep.subr.mxu0 0.0
  %882 = vmatpush1.msra.mxu0 0.0
  %883 = vmatprep.subr.mxu0 0.0
  %884 = vmatpush1.msra.mxu0 0.0
  %885 = vmatprep.subr.mxu0 0.0
  %886 = vmatpush1.msra.mxu0 0.0
  %887 = vmatprep.subr.mxu0 0.0
  %888 = vmatpush1.msra.mxu0 0.0
  %889 = vmatprep.subr.mxu0 0.0
  %890 = vmatpush1.msra.mxu0 0.0
  %891 = vmatprep.subr.mxu0 0.0
  %892 = vmatpush1.msra.mxu0 0.0
  %893 = vmatprep.subr.mxu0 0.0
  %894 = vmatpush1.msra.mxu0 0.0
  %895 = vmatprep.subr.mxu0 0.0
  %896 = vmatpush1.msra.mxu0 0.0
  %897 = vmatprep.subr.mxu0 0.0
  %898 = vmatpush1.msra.mxu0 0.0
  %899 = vmatprep.subr.mxu0 0.0
  %900 = vmatpush1.msra.mxu0 0.0
  %901 = vmatprep.subr.mxu0 0.0
  %902 = vmatpush1.msra.mxu0 0.0
  %903 = vmatprep.subr.mxu0 0.0
  %904 = vmatpush1.msra.mxu0 0.0
  %905 = vmatprep.subr.mxu0 0.0
  %906 = vmatpush1.msra.mxu0 0.0
  %907 = vmatprep.subr.mxu0 0.0
  %908 = vmatpush1.msra.mxu0 0.0
  %909 = vmatprep.subr.mxu0 0.0
  %910 = vmatpush1.msra.mxu0 0.0
  %911 = vmatprep.subr.mxu0 0.0
  %912 = vmatpush1.msra.mxu0 0.0
  %913 = vmatprep.subr.mxu0 0.0
  %914 = vmatpush1.msra.mxu0 0.0
  %915 = vmatprep.subr.mxu0 0.0
  %916 = vmatpush1.msra.mxu0 0.0
  %917 = vmatprep.subr.mxu0 0.0
  %918 = vmatpush1.msra.mxu0 0.0
  %919 = vmatprep.subr.mxu0 0.0
  %920 = vmatpush1.msra.mxu0 0.0
  %921 = vmatprep.subr.mxu0 0.0
  %922 = vmatpush1.msra.mxu0 0.0
  %923 = vmatprep.subr.mxu0 0.0
  %924 = vmatpush1.msra.mxu0 0.0
  %925 = vmatprep.subr.mxu0 0.0
  %926 = vmatpush1.msra.mxu0 0.0
  %927 = vmatprep.subr.mxu0 0.0
  %928 = vmatpush1.msra.mxu0 0.0
  %929 = vmatprep.subr.mxu0 0.0
  %930 = vmatpush1.msra.mxu0 0.0
  %931 = vmatprep.subr.mxu0 0.0
  %932 = vmatpush1.msra.mxu0 0.0
  %933 = vmatprep.subr.mxu0 0.0
  %934 = vmatpush1.msra.mxu0 0.0
  %935 = vmatprep.subr.mxu0 0.0
  %936 = vmatpush1.msra.mxu0 0.0
  %937 = vmatprep.mubr.f32.mxu0 0.0
  %938 = vmatmul.mubr.f32.gmra.mrb[0].mxu0 %v871
  %v939 = vpop.f32.mrb[0].mxu0
  %v940 = vadd.f32 %v869, %v939
  %v941 = vpop.f32.mrb[0].mxu0
  %942 = vdwg.mxu0
  %943 = vmax.xlane.f32.xlu0 %v940
  %v944 = vpop.xlane.xlu0 %943
  %v945 = vsub.f32 %v940, %v944
  %v946 = vmul.f32 %v945, 1.442695
  %v947 = vpow.pop %v946
  %948 = vadd.xlane.f32.xlu0 %v947
  %v949 = vpop.xlane.xlu0 %948
  %v950 = vlog2.pop %v949
  %v951 = vmul.f32 %v950, 0.6931472
  %v952 = vsub.f32 %v945, %v951
  %953 = vst [vmem:[%s6] sm:$0xff] %v952
  // Predicated region
  $region26: #{rnn_decoder_forward.1} parent=0 // pred_check
    _
  $region27: #{rnn_decoder_forward.1} parent=0 // pred_check_branch
    %955 = sbr.rel (0) target = $region29
  $region28: #{rnn_decoder_forward.1} parent=0 // pred_region
    _
  $region29: #{rnn_decoder_forward.1} parent=0 // pred_fallthru
    _
  // Predicated region
  $region30: #{rnn_decoder_forward.1} parent=0 // pred_check
    _
  $region31: #{rnn_decoder_forward.1} parent=0 // pred_check_branch
    %957 = sbr.rel (0) target = $region33
  $region32: #{rnn_decoder_forward.1} parent=0 // pred_region
    _
  $region33: #{rnn_decoder_forward.1} parent=0 // pred_fallthru
    _
  // Predicated region
  $region34: #{rnn_decoder_forward.1} parent=0 // pred_check
    _
  $region35: #{rnn_decoder_forward.1} parent=0 // pred_check_branch
    %959 = sbr.rel (0) target = $region37
  $region36: #{rnn_decoder_forward.1} parent=0 // pred_region
    _
  $region37: #{rnn_decoder_forward.1} parent=0 // pred_fallthru
    _
  // Predicated region
  $region38: #{rnn_decoder_forward.1} parent=0 // pred_check
    _
  $region39: #{rnn_decoder_forward.1} parent=0 // pred_check_branch
    %961 = sbr.rel (0) target = $region41
  $region40: #{rnn_decoder_forward.1} parent=0 // pred_region
    _
  $region41: #{rnn_decoder_forward.1} parent=0 // pred_fallthru
    _
  // Predicated region
  $region42: #{rnn_decoder_forward.1} parent=0 // pred_check
    _
  $region43: #{rnn_decoder_forward.1} parent=0 // pred_check_branch
    %963 = sbr.rel (0) target = $region45
  $region44: #{rnn_decoder_forward.1} parent=0 // pred_region
    _
  $region45: #{rnn_decoder_forward.1} parent=0 // pred_fallthru
    _
  // Predicated region
  $region46: #{rnn_decoder_forward.1} parent=0 // pred_check
    _
  $region47: #{rnn_decoder_forward.1} parent=0 // pred_check_branch
    %965 = sbr.rel (0) target = $region49
  $region48: #{rnn_decoder_forward.1} parent=0 // pred_region
    _
  $region49: #{rnn_decoder_forward.1} parent=0 // pred_fallthru
    _

</llo_original>
